<compile_context>
chip_gen: v6e
topology: v6e:2x2x1
jax: 0.10.0
libtpu: 0.0.40
codegen_flags: <defaults>
</compile_context>

<pallas_src>
import jax
import jax.numpy as jnp
from jax.experimental import pallas as pl
from jax.experimental.pallas import tpu as pltpu


def _tanh_softplus(x):
    """The module's Mish == Tanh(Softplus(x)), with one exp + one divide.

    tanh(log1p(u)) == u*(u+2) / (u*(u+2) + 2),  u = exp(x).
    Clamping x at 20 (PyTorch Softplus threshold) keeps u finite; for x >= 20 the
    expression rounds to exactly 1.0f, matching tanh(softplus(x)) in float32, so no
    extra select is needed.
    """
    u = jnp.exp(jnp.minimum(x, 20.0))
    n = u * (u + 2.0)
    return n / (n + 2.0)


def residual_block_kernel(x_ref, w1_ref, b1_ref, w2_ref, b2_ref, o_ref):
    # HBM/VMEM tiles are batch-major (TB, D); compute runs feature-major (D, TB) so the
    # batch sits on the 128-lane axis (packed vregs for every VPU/EUP op and both
    # matmul operand feeds).  The two relayouts run on the XLU (separate issue slots)
    # and hide under the tile DMA.
    x = x_ref[...].astype(jnp.float32).T        # (D, TB) feature-major
    w1 = w1_ref[...].astype(jnp.float32)        # (H, D)  PyTorch (out, in) layout
    w2 = w2_ref[...].astype(jnp.float32)        # (H, H)
    b1 = b1_ref[...].astype(jnp.float32)        # (H, 1)  broadcasts over lanes
    b2 = b2_ref[...].astype(jnp.float32)        # (H, 1)

    # Linear 1 + activation:  (H, D) @ (D, TB) -> (H, TB)
    h = _tanh_softplus(jnp.dot(w1, x, preferred_element_type=jnp.float32) + b1)
    # Linear 2:               (H, H) @ (H, TB) -> (H, TB)
    out = jnp.dot(w2, h, preferred_element_type=jnp.float32) + b2
    # Residual + activation, then store back batch-major (matches the HBM layout).
    y = _tanh_softplus(out + x)                 # (H, TB)
    o_ref[...] = y.T.astype(o_ref.dtype)        # (TB, H)


def _round_up(v, m):
    return (v + m - 1) // m * m


def residual_block(x, w1, b1, w2, b2, *, tb=8192):
    """x: (B, D); w1: (H, D) PyTorch layout; b1: (H,); w2: (H, H); b2: (H,). Returns (B, H)."""
    B, D = x.shape
    H = w1.shape[0]
    assert D == H, "residual add requires input_dim == hidden_dim"

    # Batch tile: multiple of 128 so the lane axis is dense after the in-kernel
    # relayout.  Large by default (8192 rows -> 1 MiB of x per buffer) to amortize the
    # ~0.35us fixed per-grid-step overhead.
    TB = max(128, min(_round_up(tb, 128), _round_up(B, 128)))
    # Guarantee >= ~4 grid steps (>= 2 per TensorCore on v7x) when the batch allows it,
    # so megacore sharding and the input/output double-buffer pipeline engage.
    if B >= 4 * 128 and pl.cdiv(B, TB) < 4:
        TB = max(128, _round_up(pl.cdiv(B, 4), 128))
    B_pad = _round_up(B, TB)

    # Only the ragged tail is padded (no copy at all when B is a multiple of TB).
    # TODO(synk): drop this pad by relying on Pallas ragged boundary blocks
    #             (grid=pl.cdiv(B, TB)) once call-site batch sizes are fixed.
    x_in = x if B_pad == B else jnp.pad(x, ((0, B_pad - B), (0, 0)))

    b1_c = b1.reshape(H, 1)
    b2_c = b2.reshape(H, 1)

    bytes_per = jnp.dtype(x.dtype).itemsize
    cost = pl.CostEstimate(
        flops=4 * B_pad * D * H,                       # two (H,D)x(D,TB)-style matmuls
        transcendentals=2 * B_pad * H,                 # one exp per activation
        bytes_accessed=(B_pad * (D + H) + w1.size + w2.size + b1.size + b2.size) * bytes_per,
    )

    y = pl.pallas_call(
        residual_block_kernel,
        out_shape=jax.ShapeDtypeStruct((B_pad, H), x.dtype),
        grid_spec=pltpu.PrefetchScalarGridSpec(
            num_scalar_prefetch=0,
            grid=(B_pad // TB,),
            in_specs=[
                pl.BlockSpec((TB, D), lambda i: (i, 0)),   # x tile, batch-major in HBM
                pl.BlockSpec((H, D), lambda i: (0, 0)),    # W1, VMEM-resident
                pl.BlockSpec((H, 1), lambda i: (0, 0)),    # b1
                pl.BlockSpec((H, H), lambda i: (0, 0)),    # W2
                pl.BlockSpec((H, 1), lambda i: (0, 0)),    # b2
            ],
            out_specs=pl.BlockSpec((TB, H), lambda i: (i, 0)),
        ),
        compiler_params=pltpu.CompilerParams(
            dimension_semantics=("parallel",),             # megacore-shardable on v7x
            vmem_limit_bytes=32 * 1024 * 1024,             # large tile also fits v5e's scoped VMEM
        ),
        cost_estimate=cost,
    )(x_in, w1, b1_c, w2, b2_c)

    # Drop batch padding (no transpose, no layout copy in the common aligned case).
    return y if B_pad == B else y[:B]


def residual_block_ref(x, w1, b1, w2, b2):
    """Pure-JAX reference matching the PyTorch forward (Softplus threshold=20 + Tanh)."""
    def mish(v):
        sp = jnp.where(v > 20.0, v, jnp.log1p(jnp.exp(jnp.minimum(v, 20.0))))
        return jnp.tanh(sp)
    h = mish(x @ w1.T + b1)
    out = h @ w2.T + b2
    return mish(out + x)


if __name__ == "__main__":
    key = jax.random.PRNGKey(0)
    B = 8
    D = 32       # input_dim
    H = 32       # hidden_dim (must equal input_dim for the residual add)

    k_x, k_w1, k_b1, k_w2, k_b2 = jax.random.split(key, 5)
    x = jax.random.normal(k_x, (B, D), dtype=jnp.float32)
    # Deterministic "synthetic checkpoint": scaled normal init, PyTorch Linear layout (out, in).
    w1 = jax.random.normal(k_w1, (H, D), dtype=jnp.float32) * 0.1
    b1 = jax.random.normal(k_b1, (H,), dtype=jnp.float32) * 0.1
    w2 = jax.random.normal(k_w2, (H, H), dtype=jnp.float32) * 0.1
    b2 = jax.random.normal(k_b2, (H,), dtype=jnp.float32) * 0.1

    y = residual_block(x, w1, b1, w2, b2)
    y = jax.block_until_ready(y)

    y_ref = residual_block_ref(x, w1, b1, w2, b2)
    assert y.shape == (B, H)
    assert jnp.allclose(y, y_ref, atol=1e-5, rtol=1e-5), "mismatch vs JAX reference"

    print("KERNEL_OK")
</pallas_src>

<mosaic_0001>
module attributes {stable_mosaic.version = 11 : i64} {
  func.func @residual_block_kernel(%arg0: i32, %arg1: memref<128x32xf32, #tpu.memory_space<vmem>>, %arg2: memref<32x32xf32, #tpu.memory_space<vmem>>, %arg3: memref<32x1xf32, #tpu.memory_space<vmem>>, %arg4: memref<32x32xf32, #tpu.memory_space<vmem>>, %arg5: memref<32x1xf32, #tpu.memory_space<vmem>>, %arg6: memref<128x32xf32, #tpu.memory_space<vmem>>) attributes {dimension_semantics = [#tpu.dimension_semantics<parallel>], iteration_bounds = array<i64: 1>, scalar_prefetch = 0 : i64, scratch_operands = 0 : i64, tpu.core_type = #tpu.core_type<tc>, window_params = [{transform_indices = @transform_0, window_bounds = array<i64: 128, 32>}, {pipeline_mode = #tpu.pipeline_mode<synchronous>, transform_indices = @transform_1, window_bounds = array<i64: 32, 32>}, {pipeline_mode = #tpu.pipeline_mode<synchronous>, transform_indices = @transform_2, window_bounds = array<i64: 32, 1>}, {pipeline_mode = #tpu.pipeline_mode<synchronous>, transform_indices = @transform_3, window_bounds = array<i64: 32, 32>}, {pipeline_mode = #tpu.pipeline_mode<synchronous>, transform_indices = @transform_4, window_bounds = array<i64: 32, 1>}, {transform_indices = @transform_5, window_bounds = array<i64: 128, 32>}]} {
    %c0 = arith.constant 0 : index
    %c0_0 = arith.constant 0 : index
    %0 = vector.load %arg1[%c0, %c0_0] : memref<128x32xf32, #tpu.memory_space<vmem>>, vector<128x32xf32>
    %1 = tpu.transpose %0, [1, 0] : vector<128x32xf32> -> vector<32x128xf32>
    %c0_1 = arith.constant 0 : index
    %c0_2 = arith.constant 0 : index
    %2 = vector.load %arg2[%c0_1, %c0_2] : memref<32x32xf32, #tpu.memory_space<vmem>>, vector<32x32xf32>
    %c0_3 = arith.constant 0 : index
    %c0_4 = arith.constant 0 : index
    %3 = vector.load %arg4[%c0_3, %c0_4] : memref<32x32xf32, #tpu.memory_space<vmem>>, vector<32x32xf32>
    %c0_5 = arith.constant 0 : index
    %c0_6 = arith.constant 0 : index
    %4 = vector.load %arg3[%c0_5, %c0_6] : memref<32x1xf32, #tpu.memory_space<vmem>>, vector<32x1xf32>
    %c0_7 = arith.constant 0 : index
    %c0_8 = arith.constant 0 : index
    %5 = vector.load %arg5[%c0_7, %c0_8] : memref<32x1xf32, #tpu.memory_space<vmem>>, vector<32x1xf32>
    %cst = arith.constant dense<0.000000e+00> : vector<32x128xf32>
    %6 = tpu.matmul %2, %1, %cst {dimension_numbers = #tpu.dot_dimension_numbers<[1], [0], [0], [1], [0, 0, 1, 1], [], []>} : vector<32x32xf32>, vector<32x128xf32>, vector<32x128xf32> -> vector<32x128xf32>
    %7 = vector.broadcast %4 : vector<32x1xf32> to vector<32x128xf32>
    %8 = arith.addf %6, %7 : vector<32x128xf32>
    %cst_9 = arith.constant 2.000000e+01 : f32
    %9 = vector.broadcast %cst_9 : f32 to vector<32x128xf32>
    %10 = arith.minimumf %8, %9 : vector<32x128xf32>
    %11 = math.exp %10 : vector<32x128xf32>
    %cst_10 = arith.constant 2.000000e+00 : f32
    %12 = vector.broadcast %cst_10 : f32 to vector<32x128xf32>
    %13 = arith.addf %11, %12 : vector<32x128xf32>
    %14 = arith.mulf %11, %13 : vector<32x128xf32>
    %cst_11 = arith.constant 2.000000e+00 : f32
    %15 = vector.broadcast %cst_11 : f32 to vector<32x128xf32>
    %16 = arith.addf %14, %15 : vector<32x128xf32>
    %17 = arith.divf %14, %16 : vector<32x128xf32>
    %cst_12 = arith.constant dense<0.000000e+00> : vector<32x128xf32>
    %18 = tpu.matmul %3, %17, %cst_12 {dimension_numbers = #tpu.dot_dimension_numbers<[1], [0], [0], [1], [0, 0, 1, 1], [], []>} : vector<32x32xf32>, vector<32x128xf32>, vector<32x128xf32> -> vector<32x128xf32>
    %19 = vector.broadcast %5 : vector<32x1xf32> to vector<32x128xf32>
    %20 = arith.addf %18, %19 : vector<32x128xf32>
    %21 = arith.addf %20, %1 : vector<32x128xf32>
    %cst_13 = arith.constant 2.000000e+01 : f32
    %22 = vector.broadcast %cst_13 : f32 to vector<32x128xf32>
    %23 = arith.minimumf %21, %22 : vector<32x128xf32>
    %24 = math.exp %23 : vector<32x128xf32>
    %cst_14 = arith.constant 2.000000e+00 : f32
    %25 = vector.broadcast %cst_14 : f32 to vector<32x128xf32>
    %26 = arith.addf %24, %25 : vector<32x128xf32>
    %27 = arith.mulf %24, %26 : vector<32x128xf32>
    %cst_15 = arith.constant 2.000000e+00 : f32
    %28 = vector.broadcast %cst_15 : f32 to vector<32x128xf32>
    %29 = arith.addf %27, %28 : vector<32x128xf32>
    %30 = arith.divf %27, %29 : vector<32x128xf32>
    %31 = tpu.transpose %30, [1, 0] : vector<32x128xf32> -> vector<128x32xf32>
    %c0_16 = arith.constant 0 : index
    %c0_17 = arith.constant 0 : index
    %32 = vector.load %arg6[%c0_16, %c0_17] : memref<128x32xf32, #tpu.memory_space<vmem>>, vector<128x32xf32>
    tpu.vector_store %arg6[%c0_16, %c0_17], %31 {strides = array<i32>} : memref<128x32xf32, #tpu.memory_space<vmem>>, vector<128x32xf32>,
    return
  }
  func.func @transform_0(%arg0: i32) -> (i32, i32) {
    %c0_i32 = arith.constant 0 : i32
    %c0_i32_0 = arith.constant 0 : i32
    return %arg0, %c0_i32 : i32, i32
  }
  func.func @transform_1(%arg0: i32) -> (i32, i32) {
    %c0_i32 = arith.constant 0 : i32
    %c0_i32_0 = arith.constant 0 : i32
    %c0_i32_1 = arith.constant 0 : i32
    return %c0_i32, %c0_i32_0 : i32, i32
  }
  func.func @transform_2(%arg0: i32) -> (i32, i32) {
    %c0_i32 = arith.constant 0 : i32
    %c0_i32_0 = arith.constant 0 : i32
    %c0_i32_1 = arith.constant 0 : i32
    return %c0_i32, %c0_i32_0 : i32, i32
  }
  func.func @transform_3(%arg0: i32) -> (i32, i32) {
    %c0_i32 = arith.constant 0 : i32
    %c0_i32_0 = arith.constant 0 : i32
    %c0_i32_1 = arith.constant 0 : i32
    return %c0_i32, %c0_i32_0 : i32, i32
  }
  func.func @transform_4(%arg0: i32) -> (i32, i32) {
    %c0_i32 = arith.constant 0 : i32
    %c0_i32_0 = arith.constant 0 : i32
    %c0_i32_1 = arith.constant 0 : i32
    return %c0_i32, %c0_i32_0 : i32, i32
  }
  func.func @transform_5(%arg0: i32) -> (i32, i32) {
    %c0_i32 = arith.constant 0 : i32
    %c0_i32_0 = arith.constant 0 : i32
    return %arg0, %c0_i32 : i32, i32
  }
}

</mosaic_0001>

<llo_original>
// kernel: tpu_custom_call.1
$region0: #{tpu_custom_call.1}
  #allocation0 [shape = 'u32[]', space=smem, size = 0x4, offset = 0x4, fixed_abs, tag = 'smem constant byte address 0x4 - core index']
  #allocation1 [shape = 'u32[144,128]{1,0:T(1,128)}', space=vmem, size = 0x12000, scoped, tag = 'internal scratch']
  %s0 = inlined_call_operand.vmem [shape: f32[128,32], index: 0, kind: input, shape index: {}]
  %s1 = inlined_call_operand.vmem [shape: f32[32,32], index: 1, kind: input, shape index: {}]
  %s2 = inlined_call_operand.vmem [shape: f32[32,1], index: 2, kind: input, shape index: {}]
  %s3 = inlined_call_operand.vmem [shape: f32[32,32], index: 3, kind: input, shape index: {}]
  %s4 = inlined_call_operand.vmem [shape: f32[32,1], index: 4, kind: input, shape index: {}]
  %s5 = inlined_call_operand.vmem [shape: f32[128,32], index: 5, kind: output, shape index: {}]
  %s6 = sld [smem:[#allocation0]]
  $region30: #{tpu_custom_call.1} parent=0
    _
  %s8 = ssub.s32 1, %s6
  %s9 = scalar_select 0, %s8, %s6
  // Predicated region
  $region2: #{tpu_custom_call.1} parent=0 // pred_check
    _
  $region3: #{tpu_custom_call.1} parent=0 // pred_check_branch
    %11 = sbr.rel (0) target = $region5
  $region4: #{tpu_custom_call.1} parent=0 // pred_region
    _
  $region5: #{tpu_custom_call.1} parent=0 // pred_fallthru
    _
  // Predicated region
  $region6: #{tpu_custom_call.1} parent=0 // pred_check
    _
  $region7: #{tpu_custom_call.1} parent=0 // pred_check_branch
    %13 = sbr.rel (0) target = $region9
  $region8: #{tpu_custom_call.1} parent=0 // pred_region
    _
  $region9: #{tpu_custom_call.1} parent=0 // pred_fallthru
    _
  // Predicated region
  $region10: #{tpu_custom_call.1} parent=0 // pred_check
    _
  $region11: #{tpu_custom_call.1} parent=0 // pred_check_branch
    %15 = sbr.rel (0) target = $region13
  $region12: #{tpu_custom_call.1} parent=0 // pred_region
    _
  $region13: #{tpu_custom_call.1} parent=0 // pred_fallthru
    _
  // Predicated region
  $region14: #{tpu_custom_call.1} parent=0 // pred_check
    _
  $region15: #{tpu_custom_call.1} parent=0 // pred_check_branch
    %17 = sbr.rel (0) target = $region17
  $region16: #{tpu_custom_call.1} parent=0 // pred_region
    _
  $region17: #{tpu_custom_call.1} parent=0 // pred_fallthru
    _
  // Predicated region
  $region18: #{tpu_custom_call.1} parent=0 // pred_check
    _
  $region19: #{tpu_custom_call.1} parent=0 // pred_check_branch
    %19 = sbr.rel (0) target = $region21
  $region20: #{tpu_custom_call.1} parent=0 // pred_region
    _
  $region21: #{tpu_custom_call.1} parent=0 // pred_fallthru
    _
  %v20 = vld [vmem:[%s0] sm:$0xff]
  %v21 = vld [vmem:[%s0 + $0x8] sm:$0xff]
  %v22 = vld [vmem:[%s0 + $0x10] sm:$0xff]
  %v23 = vld [vmem:[%s0 + $0x18] sm:$0xff]
  %v24 = vld [vmem:[%s0 + $0x20] sm:$0xff]
  %v25 = vld [vmem:[%s0 + $0x28] sm:$0xff]
  %v26 = vld [vmem:[%s0 + $0x30] sm:$0xff]
  %v27 = vld [vmem:[%s0 + $0x38] sm:$0xff]
  %v28 = vld [vmem:[%s0 + $0x40] sm:$0xff]
  %v29 = vld [vmem:[%s0 + $0x48] sm:$0xff]
  %v30 = vld [vmem:[%s0 + $0x50] sm:$0xff]
  %v31 = vld [vmem:[%s0 + $0x58] sm:$0xff]
  %v32 = vld [vmem:[%s0 + $0x60] sm:$0xff]
  %v33 = vld [vmem:[%s0 + $0x68] sm:$0xff]
  %v34 = vld [vmem:[%s0 + $0x70] sm:$0xff]
  %v35 = vld [vmem:[%s0 + $0x78] sm:$0xff]
  %36 = vxpose.xlu0.b32.start [1/16] %v20, 128
  %37 = vxpose.xlu0.b32.cont [2/16] %v21, 128
  %38 = vxpose.xlu0.b32.cont [3/16] %v22, 128
  %39 = vxpose.xlu0.b32.cont [4/16] %v23, 128
  %40 = vxpose.xlu0.b32.cont [5/16] %v24, 128
  %41 = vxpose.xlu0.b32.cont [6/16] %v25, 128
  %42 = vxpose.xlu0.b32.cont [7/16] %v26, 128
  %43 = vxpose.xlu0.b32.cont [8/16] %v27, 128
  %44 = vxpose.xlu0.b32.cont [9/16] %v28, 128
  %45 = vxpose.xlu0.b32.cont [10/16] %v29, 128
  %46 = vxpose.xlu0.b32.cont [11/16] %v30, 128
  %47 = vxpose.xlu0.b32.cont [12/16] %v31, 128
  %48 = vxpose.xlu0.b32.cont [13/16] %v32, 128
  %49 = vxpose.xlu0.b32.cont [14/16] %v33, 128
  %50 = vxpose.xlu0.b32.cont [15/16] %v34, 128
  %51 = vxpose.xlu0.b32.end [16/16] %v35, 128
  %v52 = vpop.trf.xlu0
  %v53 = vpop.trf.xlu0
  %v54 = vpop.trf.xlu0
  %v55 = vpop.trf.xlu0
  %v56 = vpop.trf.xlu0
  %v57 = vpop.trf.xlu0
  %v58 = vpop.trf.xlu0
  %v59 = vpop.trf.xlu0
  %v60 = vpop.trf.xlu0
  %v61 = vpop.trf.xlu0
  %v62 = vpop.trf.xlu0
  %v63 = vpop.trf.xlu0
  %v64 = vpop.trf.xlu0
  %v65 = vpop.trf.xlu0
  %v66 = vpop.trf.xlu0
  %v67 = vpop.trf.xlu0
  %v68 = vld [vmem:[%s1] sm:$0xff]
  %v69 = vld [vmem:[%s1 + $0x8] sm:$0xff]
  %v70 = vld [vmem:[%s1 + $0x10] sm:$0xff]
  %v71 = vld [vmem:[%s1 + $0x18] sm:$0xff]
  %v72 = vld [vmem:[%s3] sm:$0xff]
  %v73 = vld [vmem:[%s3 + $0x8] sm:$0xff]
  %v74 = vld [vmem:[%s3 + $0x10] sm:$0xff]
  %v75 = vld [vmem:[%s3 + $0x18] sm:$0xff]
  %v76 = vld [vmem:[%s2] sm:$0xff]
  %v77 = vld [vmem:[%s2 + $0x8] sm:$0xff]
  %v78 = vld [vmem:[%s2 + $0x10] sm:$0xff]
  %v79 = vld [vmem:[%s2 + $0x18] sm:$0xff]
  %v80 = vld [vmem:[%s4] sm:$0xff]
  %v81 = vld [vmem:[%s4 + $0x8] sm:$0xff]
  %v82 = vld [vmem:[%s4 + $0x10] sm:$0xff]
  %v83 = vld [vmem:[%s4 + $0x18] sm:$0xff]
  %85 = vset.pattern.permute.xlu0 0
  %86 = vperm.xlu0 %85, %v76
  %v87 = vpop.permute.xlu0 %86
  %90 = vset.pattern.permute.xlu0 0
  %91 = vperm.xlu0 %90, %v77
  %v92 = vpop.permute.xlu0 %91
  %95 = vset.pattern.permute.xlu0 0
  %96 = vperm.xlu0 %95, %v78
  %v97 = vpop.permute.xlu0 %96
  %100 = vset.pattern.permute.xlu0 0
  %101 = vperm.xlu0 %100, %v79
  %v102 = vpop.permute.xlu0 %101
  %vm104 = vcmask 261120
  %v106 = vsel %vm104, %v68, 0
  %v109 = vsel %vm104, %v69, 0
  %v112 = vsel %vm104, %v70, 0
  %v115 = vsel %vm104, %v71, 0
  %117 = vmatprep.subr.mxu0 0.0
  %118 = vmatpush1.msra.mxu0 0.0
  %119 = vmatprep.subr.mxu0 0.0
  %120 = vmatpush1.msra.mxu0 0.0
  %121 = vmatprep.subr.mxu0 0.0
  %122 = vmatpush1.msra.mxu0 0.0
  %123 = vmatprep.subr.mxu0 0.0
  %124 = vmatpush1.msra.mxu0 0.0
  %125 = vmatprep.subr.mxu0 0.0
  %126 = vmatpush1.msra.mxu0 0.0
  %127 = vmatprep.subr.mxu0 0.0
  %128 = vmatpush1.msra.mxu0 0.0
  %129 = vmatprep.subr.mxu0 0.0
  %130 = vmatpush1.msra.mxu0 0.0
  %131 = vmatprep.subr.mxu0 0.0
  %132 = vmatpush1.msra.mxu0 0.0
  %133 = vmatprep.subr.mxu0 0.0
  %134 = vmatpush1.msra.mxu0 0.0
  %135 = vmatprep.subr.mxu0 0.0
  %136 = vmatpush1.msra.mxu0 0.0
  %137 = vmatprep.subr.mxu0 0.0
  %138 = vmatpush1.msra.mxu0 0.0
  %139 = vmatprep.subr.mxu0 0.0
  %140 = vmatpush1.msra.mxu0 0.0
  %141 = vmatprep.subr.mxu0 0.0
  %142 = vmatpush1.msra.mxu0 %v55
  %143 = vmatprep.subr.mxu0 0.0
  %144 = vmatpush1.msra.mxu0 %v54
  %145 = vmatprep.subr.mxu0 0.0
  %146 = vmatpush1.msra.mxu0 %v53
  %147 = vmatprep.subr.mxu0 0.0
  %148 = vmatpush1.msra.mxu0 %v52
  %149 = vmatprep.subr.mxu0 0.0
  %150 = vmatpush2.msra.mxu0 0.0
  %151 = vmatprep.subr.mxu0 0.0
  %152 = vmatpush2.msra.mxu0 0.0
  %153 = vmatprep.subr.mxu0 0.0
  %154 = vmatpush2.msra.mxu0 0.0
  %155 = vmatprep.subr.mxu0 0.0
  %156 = vmatpush2.msra.mxu0 0.0
  %157 = vmatprep.subr.mxu0 0.0
  %158 = vmatpush2.msra.mxu0 0.0
  %159 = vmatprep.subr.mxu0 0.0
  %160 = vmatpush2.msra.mxu0 0.0
  %161 = vmatprep.subr.mxu0 0.0
  %162 = vmatpush2.msra.mxu0 0.0
  %163 = vmatprep.subr.mxu0 0.0
  %164 = vmatpush2.msra.mxu0 0.0
  %165 = vmatprep.subr.mxu0 0.0
  %166 = vmatpush2.msra.mxu0 0.0
  %167 = vmatprep.subr.mxu0 0.0
  %168 = vmatpush2.msra.mxu0 0.0
  %169 = vmatprep.subr.mxu0 0.0
  %170 = vmatpush2.msra.mxu0 0.0
  %171 = vmatprep.subr.mxu0 0.0
  %172 = vmatpush2.msra.mxu0 0.0
  %173 = vmatprep.subr.mxu0 0.0
  %174 = vmatpush2.msra.mxu0 0.0
  %175 = vmatprep.subr.mxu0 0.0
  %176 = vmatpush2.msra.mxu0 0.0
  %177 = vmatprep.subr.mxu0 0.0
  %178 = vmatpush2.msra.mxu0 0.0
  %179 = vmatprep.subr.mxu0 0.0
  %180 = vmatpush2.msra.mxu0 0.0
  %181 = vmatprep.mubr.f32.mxu0 0.0
  %182 = vmatmul.mubr.f32.gmra.mxu0 %v106
  %v183 = vpop.f32.mrf.mxu0
  %v184 = vadd.f32 %v87, %v183
  %v185 = vpop.f32.mrf.mxu0
  %186 = vmatprep.mubr.f32.mxu0 0.0
  %187 = vmatmul.mubr.f32.gmra.mxu0 %v109
  %v188 = vpop.f32.mrf.mxu0
  %v189 = vadd.f32 %v92, %v188
  %v190 = vpop.f32.mrf.mxu0
  %191 = vmatprep.mubr.f32.mxu0 0.0
  %192 = vmatmul.mubr.f32.gmra.mxu0 %v112
  %v193 = vpop.f32.mrf.mxu0
  %v194 = vadd.f32 %v97, %v193
  %v195 = vpop.f32.mrf.mxu0
  %196 = vmatprep.mubr.f32.mxu0 0.0
  %197 = vmatmul.mubr.f32.gmra.mxu0 %v115
  %v198 = vpop.f32.mrf.mxu0
  %v199 = vadd.f32 %v102, %v198
  %v200 = vpop.f32.mrf.mxu0
  %201 = vdwg.mxu0
  %v202 = vmin.f32 %v184, 20.0
  %v203 = vmin.f32 %v189, 20.0
  %v204 = vmin.f32 %v194, 20.0
  %v205 = vmin.f32 %v199, 20.0
  %v206 = vmul.f32 %v202, 1.442695
  %v207 = vpow.pop %v206
  %v208 = vmul.f32 %v203, 1.442695
  %v209 = vpow.pop %v208
  %v210 = vmul.f32 %v204, 1.442695
  %v211 = vpow.pop %v210
  %v212 = vmul.f32 %v205, 1.442695
  %v213 = vpow.pop %v212
  %v214 = vadd.f32 %v207, 2.0
  %v215 = vadd.f32 %v209, 2.0
  %v216 = vadd.f32 %v211, 2.0
  %v217 = vadd.f32 %v213, 2.0
  %v218 = vmul.f32 %v207, %v214
  %v219 = vmul.f32 %v209, %v215
  %v220 = vmul.f32 %v211, %v216
  %v221 = vmul.f32 %v213, %v217
  %v222 = vadd.f32 %v218, 2.0
  %v223 = vadd.f32 %v219, 2.0
  %v224 = vadd.f32 %v220, 2.0
  %v225 = vadd.f32 %v221, 2.0
  %v226 = vrcp.pop %v222
  %v227 = vmul.f32 %v218, %v226
  %v228 = vrcp.pop %v223
  %v229 = vmul.f32 %v219, %v228
  %v230 = vrcp.pop %v224
  %v231 = vmul.f32 %v220, %v230
  %v232 = vrcp.pop %v225
  %v233 = vmul.f32 %v221, %v232
  %235 = vset.pattern.permute.xlu0 0
  %236 = vperm.xlu0 %235, %v80
  %v237 = vpop.permute.xlu0 %236
  %240 = vset.pattern.permute.xlu0 0
  %241 = vperm.xlu0 %240, %v81
  %v242 = vpop.permute.xlu0 %241
  %245 = vset.pattern.permute.xlu0 0
  %246 = vperm.xlu0 %245, %v82
  %v247 = vpop.permute.xlu0 %246
  %250 = vset.pattern.permute.xlu0 0
  %251 = vperm.xlu0 %250, %v83
  %v252 = vpop.permute.xlu0 %251
  %v255 = vsel %vm104, %v72, 0
  %v258 = vsel %vm104, %v73, 0
  %v261 = vsel %vm104, %v74, 0
  %v264 = vsel %vm104, %v75, 0
  %266 = vmatprep.subr.mxu0 0.0
  %267 = vmatpush1.msra.mxu0 0.0
  %268 = vmatprep.subr.mxu0 0.0
  %269 = vmatpush1.msra.mxu0 0.0
  %270 = vmatprep.subr.mxu0 0.0
  %271 = vmatpush1.msra.mxu0 0.0
  %272 = vmatprep.subr.mxu0 0.0
  %273 = vmatpush1.msra.mxu0 0.0
  %274 = vmatprep.subr.mxu0 0.0
  %275 = vmatpush1.msra.mxu0 0.0
  %276 = vmatprep.subr.mxu0 0.0
  %277 = vmatpush1.msra.mxu0 0.0
  %278 = vmatprep.subr.mxu0 0.0
  %279 = vmatpush1.msra.mxu0 0.0
  %280 = vmatprep.subr.mxu0 0.0
  %281 = vmatpush1.msra.mxu0 0.0
  %282 = vmatprep.subr.mxu0 0.0
  %283 = vmatpush1.msra.mxu0 0.0
  %284 = vmatprep.subr.mxu0 0.0
  %285 = vmatpush1.msra.mxu0 0.0
  %286 = vmatprep.subr.mxu0 0.0
  %287 = vmatpush1.msra.mxu0 0.0
  %288 = vmatprep.subr.mxu0 0.0
  %289 = vmatpush1.msra.mxu0 0.0
  %290 = vmatprep.subr.mxu0 0.0
  %291 = vmatpush1.msra.mxu0 %v233
  %292 = vmatprep.subr.mxu0 0.0
  %293 = vmatpush1.msra.mxu0 %v231
  %294 = vmatprep.subr.mxu0 0.0
  %295 = vmatpush1.msra.mxu0 %v229
  %296 = vmatprep.subr.mxu0 0.0
  %297 = vmatpush1.msra.mxu0 %v227
  %298 = vmatprep.subr.mxu0 0.0
  %299 = vmatpush2.msra.mxu0 0.0
  %300 = vmatprep.subr.mxu0 0.0
  %301 = vmatpush2.msra.mxu0 0.0
  %302 = vmatprep.subr.mxu0 0.0
  %303 = vmatpush2.msra.mxu0 0.0
  %304 = vmatprep.subr.mxu0 0.0
  %305 = vmatpush2.msra.mxu0 0.0
  %306 = vmatprep.subr.mxu0 0.0
  %307 = vmatpush2.msra.mxu0 0.0
  %308 = vmatprep.subr.mxu0 0.0
  %309 = vmatpush2.msra.mxu0 0.0
  %310 = vmatprep.subr.mxu0 0.0
  %311 = vmatpush2.msra.mxu0 0.0
  %312 = vmatprep.subr.mxu0 0.0
  %313 = vmatpush2.msra.mxu0 0.0
  %314 = vmatprep.subr.mxu0 0.0
  %315 = vmatpush2.msra.mxu0 0.0
  %316 = vmatprep.subr.mxu0 0.0
  %317 = vmatpush2.msra.mxu0 0.0
  %318 = vmatprep.subr.mxu0 0.0
  %319 = vmatpush2.msra.mxu0 0.0
  %320 = vmatprep.subr.mxu0 0.0
  %321 = vmatpush2.msra.mxu0 0.0
  %322 = vmatprep.subr.mxu0 0.0
  %323 = vmatpush2.msra.mxu0 0.0
  %324 = vmatprep.subr.mxu0 0.0
  %325 = vmatpush2.msra.mxu0 0.0
  %326 = vmatprep.subr.mxu0 0.0
  %327 = vmatpush2.msra.mxu0 0.0
  %328 = vmatprep.subr.mxu0 0.0
  %329 = vmatpush2.msra.mxu0 0.0
  %330 = vmatprep.mubr.f32.mxu0 0.0
  %331 = vmatmul.mubr.f32.gmra.mxu0 %v255
  %v332 = vpop.f32.mrf.mxu0
  %v333 = vadd.f32 %v237, %v332
  %v334 = vpop.f32.mrf.mxu0
  %335 = vmatprep.mubr.f32.mxu0 0.0
  %336 = vmatmul.mubr.f32.gmra.mxu0 %v258
  %v337 = vpop.f32.mrf.mxu0
  %v338 = vadd.f32 %v242, %v337
  %v339 = vpop.f32.mrf.mxu0
  %340 = vmatprep.mubr.f32.mxu0 0.0
  %341 = vmatmul.mubr.f32.gmra.mxu0 %v261
  %v342 = vpop.f32.mrf.mxu0
  %v343 = vadd.f32 %v247, %v342
  %v344 = vpop.f32.mrf.mxu0
  %345 = vmatprep.mubr.f32.mxu0 0.0
  %346 = vmatmul.mubr.f32.gmra.mxu0 %v264
  %v347 = vpop.f32.mrf.mxu0
  %v348 = vadd.f32 %v252, %v347
  %v349 = vpop.f32.mrf.mxu0
  %350 = vdwg.mxu0
  %v351 = vadd.f32 %v333, %v52
  %v352 = vadd.f32 %v338, %v53
  %v353 = vadd.f32 %v343, %v54
  %v354 = vadd.f32 %v348, %v55
  %v355 = vmin.f32 %v351, 20.0
  %v356 = vmin.f32 %v352, 20.0
  %v357 = vmin.f32 %v353, 20.0
  %v358 = vmin.f32 %v354, 20.0
  %v359 = vmul.f32 %v355, 1.442695
  %v360 = vpow.pop %v359
  %v361 = vmul.f32 %v356, 1.442695
  %v362 = vpow.pop %v361
  %v363 = vmul.f32 %v357, 1.442695
  %v364 = vpow.pop %v363
  %v365 = vmul.f32 %v358, 1.442695
  %v366 = vpow.pop %v365
  %v367 = vadd.f32 %v360, 2.0
  %v368 = vadd.f32 %v362, 2.0
  %v369 = vadd.f32 %v364, 2.0
  %v370 = vadd.f32 %v366, 2.0
  %v371 = vmul.f32 %v360, %v367
  %v372 = vmul.f32 %v362, %v368
  %v373 = vmul.f32 %v364, %v369
  %v374 = vmul.f32 %v366, %v370
  %v375 = vadd.f32 %v371, 2.0
  %v376 = vadd.f32 %v372, 2.0
  %v377 = vadd.f32 %v373, 2.0
  %v378 = vadd.f32 %v374, 2.0
  %v379 = vrcp.pop %v375
  %v380 = vmul.f32 %v371, %v379
  %v381 = vrcp.pop %v376
  %v382 = vmul.f32 %v372, %v381
  %v383 = vrcp.pop %v377
  %v384 = vmul.f32 %v373, %v383
  %v385 = vrcp.pop %v378
  %v386 = vmul.f32 %v374, %v385
  %387 = vxpose.xlu0.b32.start [1/16] %v380, 128
  %388 = vxpose.xlu0.b32.cont [2/16] %v382, 128
  %389 = vxpose.xlu0.b32.cont [3/16] %v384, 128
  %390 = vxpose.xlu0.b32.cont [4/16] %v386, 128
  %391 = vxpose.xlu0.b32.cont [5/16] 0.0, 128
  %392 = vxpose.xlu0.b32.cont [6/16] 0.0, 128
  %393 = vxpose.xlu0.b32.cont [7/16] 0.0, 128
  %394 = vxpose.xlu0.b32.cont [8/16] 0.0, 128
  %395 = vxpose.xlu0.b32.cont [9/16] 0.0, 128
  %396 = vxpose.xlu0.b32.cont [10/16] 0.0, 128
  %397 = vxpose.xlu0.b32.cont [11/16] 0.0, 128
  %398 = vxpose.xlu0.b32.cont [12/16] 0.0, 128
  %399 = vxpose.xlu0.b32.cont [13/16] 0.0, 128
  %400 = vxpose.xlu0.b32.cont [14/16] 0.0, 128
  %401 = vxpose.xlu0.b32.cont [15/16] 0.0, 128
  %402 = vxpose.xlu0.b32.end [16/16] 0.0, 128
  %v403 = vpop.trf.xlu0
  %v404 = vpop.trf.xlu0
  %v405 = vpop.trf.xlu0
  %v406 = vpop.trf.xlu0
  %v407 = vpop.trf.xlu0
  %v408 = vpop.trf.xlu0
  %v409 = vpop.trf.xlu0
  %v410 = vpop.trf.xlu0
  %v411 = vpop.trf.xlu0
  %v412 = vpop.trf.xlu0
  %v413 = vpop.trf.xlu0
  %v414 = vpop.trf.xlu0
  %v415 = vpop.trf.xlu0
  %v416 = vpop.trf.xlu0
  %v417 = vpop.trf.xlu0
  %v418 = vpop.trf.xlu0
  %419 = vst.msk [vmem:[%s5] sm:$0xff] %vm104, %v403
  %420 = vst.msk [vmem:[%s5 + $0x8] sm:$0xff] %vm104, %v404
  %421 = vst.msk [vmem:[%s5 + $0x10] sm:$0xff] %vm104, %v405
  %422 = vst.msk [vmem:[%s5 + $0x18] sm:$0xff] %vm104, %v406
  %423 = vst.msk [vmem:[%s5 + $0x20] sm:$0xff] %vm104, %v407
  %424 = vst.msk [vmem:[%s5 + $0x28] sm:$0xff] %vm104, %v408
  %425 = vst.msk [vmem:[%s5 + $0x30] sm:$0xff] %vm104, %v409
  %426 = vst.msk [vmem:[%s5 + $0x38] sm:$0xff] %vm104, %v410
  %427 = vst.msk [vmem:[%s5 + $0x40] sm:$0xff] %vm104, %v411
  %428 = vst.msk [vmem:[%s5 + $0x48] sm:$0xff] %vm104, %v412
  %429 = vst.msk [vmem:[%s5 + $0x50] sm:$0xff] %vm104, %v413
  %430 = vst.msk [vmem:[%s5 + $0x58] sm:$0xff] %vm104, %v414
  %431 = vst.msk [vmem:[%s5 + $0x60] sm:$0xff] %vm104, %v415
  %432 = vst.msk [vmem:[%s5 + $0x68] sm:$0xff] %vm104, %v416
  %433 = vst.msk [vmem:[%s5 + $0x70] sm:$0xff] %vm104, %v417
  %434 = vst.msk [vmem:[%s5 + $0x78] sm:$0xff] %vm104, %v418
  // Predicated region
  $region22: #{tpu_custom_call.1} parent=0 // pred_check
    _
  $region23: #{tpu_custom_call.1} parent=0 // pred_check_branch
    %436 = sbr.rel (0) target = $region25
  $region24: #{tpu_custom_call.1} parent=0 // pred_region
    _
  $region25: #{tpu_custom_call.1} parent=0 // pred_fallthru
    _
  // Predicated region
  $region26: #{tpu_custom_call.1} parent=0 // pred_check
    _
  $region27: #{tpu_custom_call.1} parent=0 // pred_check_branch
    %438 = sbr.rel (0) target = $region29
  $region28: #{tpu_custom_call.1} parent=0 // pred_region
    _
  $region29: #{tpu_custom_call.1} parent=0 // pred_fallthru
    _

</llo_original>
